<compile_context>
chip_gen: v5e
topology: v5e:2x2
jax: 0.10.0
libtpu: 0.0.40
codegen_flags: <defaults>
</compile_context>

<pallas_src>
import functools

import jax
import jax.numpy as jnp
import numpy as np
from jax import lax
from jax.experimental import pallas as pl
from jax.experimental.pallas import tpu as pltpu


def _sattn_kernel(x_ref, wqkv_ref, wp_ref, bp_ref, o_ref, *, num_heads):
    """One batch element per grid step.

    x_ref:    (1, N, C)   f32
    wqkv_ref: (3C, 3C)    bf16  rows = tap-major input blocks [x(n-1); x(n); x(n+1)],
                                cols = [q | k | v]; attention scale folded into q cols
    wp_ref:   (C, C)      bf16  output projection (in, out)
    bp_ref:   (1, C)      f32   projection bias
    o_ref:    (1, N, C)   f32
    """
    x = x_ref[0]                                   # (N, C) f32
    N, C = x.shape
    Dh = C // num_heads

    # Circular k=3 conv taps: output at n depends on x[(n-1)%N], x[n], x[(n+1)%N].
    x_prev = pltpu.roll(x, shift=1, axis=0)        # x[(n-1) % N]
    x_next = pltpu.roll(x, shift=N - 1, axis=0)    # x[(n+1) % N]
    x3 = jnp.concatenate([x_prev, x, x_next], axis=-1).astype(jnp.bfloat16)   # (N, 3C)

    # Single deep-K MXU matmul for all taps of q, k and v (k=1 conv pre-folded offline).
    qkv = jnp.dot(x3, wqkv_ref[...], preferred_element_type=jnp.float32)      # (N, 3C) f32
    qb = qkv[:, :C].astype(jnp.bfloat16)
    kb = qkv[:, C:2 * C].astype(jnp.bfloat16)
    vb = qkv[:, 2 * C:].astype(jnp.bfloat16)

    wp = wp_ref[...]                               # (C, C) bf16, loaded once

    # Multi-head attention with the projection folded into the head loop:
    #   out = sum_h softmax(q_h @ k_h^T * scale) @ v_h @ Wp[h*Dh:(h+1)*Dh, :]
    # TODO(synk): for large N, tile kv with an online-softmax (flash) accumulator instead
    # of materializing the full (N, N) score matrix per head.
    acc = jnp.zeros((N, C), jnp.float32)
    for h in range(num_heads):
        sl = slice(h * Dh, (h + 1) * Dh)
        qh = qb[:, sl]                                                        # (N, Dh)
        kh = kb[:, sl]
        vh = vb[:, sl]
        # q @ k^T without an explicit transpose: contract dim 1 of both operands.
        s = lax.dot_general(qh, kh, (((1,), (1,)), ((), ())),
                            preferred_element_type=jnp.float32)               # (N, N) f32
        s = s - jnp.max(s, axis=-1, keepdims=True)
        p = jnp.exp(s)
        inv = pl.reciprocal(jnp.sum(p, axis=-1, keepdims=True), approx=True)
        p = (p * inv).astype(jnp.bfloat16)
        head_out = jnp.dot(p, vh, preferred_element_type=jnp.float32)         # (N, Dh)
        acc = acc + jnp.dot(head_out.astype(jnp.bfloat16), wp[sl, :],
                            preferred_element_type=jnp.float32)               # (N, C)

    o_ref[...] = (acc + bp_ref[...])[None, :, :].astype(o_ref.dtype)


def sattention_forward(x, fused, num_heads):
    """x: (B, N, C) float32. fused: dict from fuse_params()."""
    B, N, C = x.shape
    kernel = functools.partial(_sattn_kernel, num_heads=num_heads)
    wqkv, wp, bp = fused["wqkv"], fused["wp"], fused["bp"]

    # Explicit scoped-VMEM budget: bf16 weights + double-buffered x/out blocks + headroom
    # for in-kernel intermediates; capped at 64 MiB so it is also valid on v7x.
    weight_bytes = (wqkv.size * wqkv.dtype.itemsize
                    + wp.size * wp.dtype.itemsize
                    + bp.size * 4)
    io_bytes = 2 * 2 * N * C * 4                      # x + out, double-buffered
    interm_bytes = (3 * N * 3 * C + 4 * N * N) * 4    # x3/qkv/acc + per-head score tiles
    vmem_limit = int(min(64 * 1024 * 1024,
                         max(32 * 1024 * 1024,
                             4 * (2 * weight_bytes + io_bytes + interm_bytes))))

    return pl.pallas_call(
        kernel,
        out_shape=jax.ShapeDtypeStruct((B, N, C), jnp.float32),
        grid_spec=pltpu.PrefetchScalarGridSpec(
            num_scalar_prefetch=0,
            grid=(B,),
            in_specs=[
                pl.BlockSpec((1, N, C), lambda b: (b, 0, 0)),        # x
                pl.BlockSpec((3 * C, 3 * C), lambda b: (0, 0)),      # fused qkv weight
                pl.BlockSpec((C, C), lambda b: (0, 0)),              # proj weight
                pl.BlockSpec((1, C), lambda b: (0, 0)),              # proj bias
            ],
            out_specs=pl.BlockSpec((1, N, C), lambda b: (b, 0, 0)),
        ),
        compiler_params=pltpu.CompilerParams(
            dimension_semantics=("parallel",),
            vmem_limit_bytes=vmem_limit,
        ),
    )(x, wqkv, wp, bp)


def init_params(key, d_model):
    """Deterministic init mirroring the PyTorch module's parameter shapes.

    Conv1d(k=1): weight (C_out, C_in, 1)  -> stored transposed as (C_in, C_out).
    Conv1d(k=3): weight (C_out, C_in, 3)  -> stored as (3, C_in, C_out) (tap-major).
    kaiming_normal_(fan_in, leaky_relu) std = sqrt(2/(1+0.01^2)) / sqrt(fan_in).
    """
    C = d_model
    keys = jax.random.split(key, 8)
    gain = np.sqrt(2.0 / (1.0 + 0.01 ** 2))

    def k1(k):
        std = gain / np.sqrt(C * 1)
        w = std * jax.random.normal(k, (C, C, 1), dtype=jnp.float32)   # (out, in, 1)
        return jnp.transpose(w[:, :, 0], (1, 0))                       # (in, out)

    def k3(k):
        std = gain / np.sqrt(C * 3)
        w = std * jax.random.normal(k, (C, C, 3), dtype=jnp.float32)   # (out, in, 3)
        return jnp.transpose(w, (2, 1, 0))                             # (tap, in, out)

    # proj Conv1d(k=1) default PyTorch init (kaiming_uniform); any deterministic init is fine.
    bound = 1.0 / np.sqrt(C)
    wp = jax.random.uniform(keys[6], (C, C, 1), dtype=jnp.float32, minval=-bound, maxval=bound)
    bp = jax.random.uniform(keys[7], (1, C), dtype=jnp.float32, minval=-bound, maxval=bound)

    return {
        "w1q": k1(keys[0]), "w2q": k3(keys[1]),
        "w1k": k1(keys[2]), "w2k": k3(keys[3]),
        "w1v": k1(keys[4]), "w2v": k3(keys[5]),
        "wp": jnp.transpose(wp[:, :, 0], (1, 0)),                      # (in, out)
        "bp": bp,
    }


def fuse_params(params, num_heads):
    """Host-side algebraic folding for the kernel.

    Folds the k=1 conv into the k=3 conv taps (Wf[t] = W1 @ W2[t]; valid because
    roll(x @ W1) == roll(x) @ W1) and fuses taps x {q,k,v} into one (3C, 3C) bf16 weight:
    rows are tap-major input blocks matching concat([x_prev, x, x_next], -1), columns are
    [q | k | v]. The attention scale (head_dim^-0.5) is folded into the q columns.
    """
    C = params["wp"].shape[0]
    scale = (C // num_heads) ** -0.5

    def fold(w1, w2):                               # w1: (C,C) in->out; w2: (3,C,C) tap,in,out
        return jnp.einsum("ij,tjk->tik", w1, w2)    # (3, C, C): x @ fold[t] == (x @ w1) @ w2[t]

    fq = fold(params["w1q"], params["w2q"]) * scale
    fk = fold(params["w1k"], params["w2k"])
    fv = fold(params["w1v"], params["w2v"])
    wqkv = jnp.concatenate(
        [jnp.concatenate([fq[t], fk[t], fv[t]], axis=1) for t in range(3)], axis=0)  # (3C, 3C)

    return {
        "wqkv": wqkv.astype(jnp.bfloat16),
        "wp": params["wp"].astype(jnp.bfloat16),
        "bp": params["bp"],                         # f32: added after the f32 accumulation
    }


def reference_forward(x, params, num_heads):
    """Pure-JAX f32 reference of the original (unfused) module math."""
    B, N, C = x.shape
    Dh = C // num_heads
    scale = Dh ** -0.5

    def branch(w1t, w2t):
        h = x @ w1t
        hp = jnp.roll(h, 1, axis=1)
        hn = jnp.roll(h, -1, axis=1)
        return hp @ w2t[0] + h @ w2t[1] + hn @ w2t[2]

    q = branch(params["w1q"], params["w2q"])
    k = branch(params["w1k"], params["w2k"])
    v = branch(params["w1v"], params["w2v"])

    def heads(t):
        return t.reshape(B, N, num_heads, Dh).transpose(0, 2, 1, 3)   # (B, H, N, Dh)

    qh, kh, vh = heads(q), heads(k), heads(v)
    attn = jnp.einsum("bhnd,bhmd->bhnm", qh, kh) * scale
    attn = jax.nn.softmax(attn, axis=-1)
    ctx = jnp.einsum("bhnm,bhmd->bhnd", attn, vh)
    ctx = ctx.transpose(0, 2, 1, 3).reshape(B, N, C)
    return ctx @ params["wp"] + params["bp"]


if __name__ == "__main__":
    B, N, d_model, num_heads = 2, 8, 32, 4

    key = jax.random.PRNGKey(0)
    kx, kp = jax.random.split(key)
    x = jax.random.normal(kx, (B, N, d_model), dtype=jnp.float32)
    params = init_params(kp, d_model)
    fused = fuse_params(params, num_heads)

    out = sattention_forward(x, fused, num_heads)
    out = jax.block_until_ready(out)

    ref = reference_forward(x, params, num_heads)
    # bf16 matmuls + folded weights + approx reciprocal -> slightly looser tolerance.
    np.testing.assert_allclose(np.asarray(out), np.asarray(ref), rtol=2e-2, atol=2e-2)

    print("KERNEL_OK")
</pallas_src>

<mosaic_0001>
module attributes {stable_mosaic.version = 11 : i64} {
  func.func @_sattn_kernel(%arg0: i32, %arg1: memref<1x8x32xf32, #tpu.memory_space<vmem>>, %arg2: memref<96x96xbf16, #tpu.memory_space<vmem>>, %arg3: memref<32x32xbf16, #tpu.memory_space<vmem>>, %arg4: memref<1x32xf32, #tpu.memory_space<vmem>>, %arg5: memref<1x8x32xf32, #tpu.memory_space<vmem>>) attributes {dimension_semantics = [#tpu.dimension_semantics<parallel>], iteration_bounds = array<i64: 2>, scalar_prefetch = 0 : i64, scratch_operands = 0 : i64, tpu.core_type = #tpu.core_type<tc>, window_params = [{transform_indices = @transform_0, window_bounds = array<i64: 1, 8, 32>}, {pipeline_mode = #tpu.pipeline_mode<synchronous>, transform_indices = @transform_1, window_bounds = array<i64: 96, 96>}, {pipeline_mode = #tpu.pipeline_mode<synchronous>, transform_indices = @transform_2, window_bounds = array<i64: 32, 32>}, {pipeline_mode = #tpu.pipeline_mode<synchronous>, transform_indices = @transform_3, window_bounds = array<i64: 1, 32>}, {transform_indices = @transform_4, window_bounds = array<i64: 1, 8, 32>}]} {
    %c0 = arith.constant 0 : index
    %c0_0 = arith.constant 0 : index
    %c0_1 = arith.constant 0 : index
    %0 = vector.load %arg1[%c0, %c0_0, %c0_1] : memref<1x8x32xf32, #tpu.memory_space<vmem>>, vector<1x8x32xf32>
    %1 = vector.shape_cast %0 : vector<1x8x32xf32> to vector<8x32xf32>
    %c1_i32 = arith.constant 1 : i32
    %2 = tpu.dynamic_rotate %1 by %c1_i32 dim 0 : vector<8x32xf32>, i32 -> vector<8x32xf32>
    %c7_i32 = arith.constant 7 : i32
    %3 = tpu.dynamic_rotate %1 by %c7_i32 dim 0 : vector<8x32xf32>, i32 -> vector<8x32xf32>
    %4 = tpu.concatenate %2, %1, %3 in 1 : vector<8x32xf32>, vector<8x32xf32>, vector<8x32xf32> -> vector<8x96xf32>
    %5 = arith.truncf %4 : vector<8x96xf32> to vector<8x96xbf16>
    %c0_2 = arith.constant 0 : index
    %c0_3 = arith.constant 0 : index
    %6 = vector.load %arg2[%c0_2, %c0_3] : memref<96x96xbf16, #tpu.memory_space<vmem>>, vector<96x96xbf16>
    %cst = arith.constant dense<0.000000e+00> : vector<8x96xf32>
    %7 = tpu.matmul %5, %6, %cst {dimension_numbers = #tpu.dot_dimension_numbers<[1], [0], [0], [1], [0, 0, 1, 1], [], []>} : vector<8x96xbf16>, vector<96x96xbf16>, vector<8x96xf32> -> vector<8x96xf32>
    %8 = vector.extract_strided_slice %7 {offsets = [0, 0], sizes = [8, 32], strides = [1, 1]} : vector<8x96xf32> to vector<8x32xf32>
    %9 = arith.truncf %8 : vector<8x32xf32> to vector<8x32xbf16>
    %10 = vector.extract_strided_slice %7 {offsets = [0, 32], sizes = [8, 32], strides = [1, 1]} : vector<8x96xf32> to vector<8x32xf32>
    %11 = arith.truncf %10 : vector<8x32xf32> to vector<8x32xbf16>
    %12 = vector.extract_strided_slice %7 {offsets = [0, 64], sizes = [8, 32], strides = [1, 1]} : vector<8x96xf32> to vector<8x32xf32>
    %13 = arith.truncf %12 : vector<8x32xf32> to vector<8x32xbf16>
    %c0_4 = arith.constant 0 : index
    %c0_5 = arith.constant 0 : index
    %14 = vector.load %arg3[%c0_4, %c0_5] : memref<32x32xbf16, #tpu.memory_space<vmem>>, vector<32x32xbf16>
    %cst_6 = arith.constant 0.000000e+00 : f32
    %15 = vector.broadcast %cst_6 : f32 to vector<8x32xf32>
    %16 = vector.extract_strided_slice %9 {offsets = [0, 0], sizes = [8, 8], strides = [1, 1]} : vector<8x32xbf16> to vector<8x8xbf16>
    %17 = vector.extract_strided_slice %11 {offsets = [0, 0], sizes = [8, 8], strides = [1, 1]} : vector<8x32xbf16> to vector<8x8xbf16>
    %18 = vector.extract_strided_slice %13 {offsets = [0, 0], sizes = [8, 8], strides = [1, 1]} : vector<8x32xbf16> to vector<8x8xbf16>
    %cst_7 = arith.constant dense<0.000000e+00> : vector<8x8xf32>
    %19 = tpu.matmul %16, %17, %cst_7 {dimension_numbers = #tpu.dot_dimension_numbers<[1], [1], [0], [0], [0, 0, 1, 0], [], []>} : vector<8x8xbf16>, vector<8x8xbf16>, vector<8x8xf32> -> vector<8x8xf32>
    %cst_8 = arith.constant dense<0xFF800000> : vector<8xf32>
    %20 = vector.multi_reduction <maximumf>, %19, %cst_8 [1] : vector<8x8xf32> to vector<8xf32>
    %21 = vector.shape_cast %20 : vector<8xf32> to vector<8x1xf32>
    %22 = vector.broadcast %21 : vector<8x1xf32> to vector<8x8xf32>
    %23 = arith.subf %19, %22 : vector<8x8xf32>
    %24 = math.exp %23 : vector<8x8xf32>
    %cst_9 = arith.constant dense<0.000000e+00> : vector<8xf32>
    %25 = vector.multi_reduction <add>, %24, %cst_9 [1] : vector<8x8xf32> to vector<8xf32>
    %26 = vector.shape_cast %25 : vector<8xf32> to vector<8x1xf32>
    %27 = tpu.reciprocal %26 {approx = true} : vector<8x1xf32> -> vector<8x1xf32>
    %28 = vector.broadcast %27 : vector<8x1xf32> to vector<8x8xf32>
    %29 = arith.mulf %24, %28 : vector<8x8xf32>
    %30 = arith.truncf %29 : vector<8x8xf32> to vector<8x8xbf16>
    %cst_10 = arith.constant dense<0.000000e+00> : vector<8x8xf32>
    %31 = tpu.matmul %30, %18, %cst_10 {dimension_numbers = #tpu.dot_dimension_numbers<[1], [0], [0], [1], [0, 0, 1, 1], [], []>} : vector<8x8xbf16>, vector<8x8xbf16>, vector<8x8xf32> -> vector<8x8xf32>
    %32 = arith.truncf %31 : vector<8x8xf32> to vector<8x8xbf16>
    %33 = vector.extract_strided_slice %14 {offsets = [0, 0], sizes = [8, 32], strides = [1, 1]} : vector<32x32xbf16> to vector<8x32xbf16>
    %cst_11 = arith.constant dense<0.000000e+00> : vector<8x32xf32>
    %34 = tpu.matmul %32, %33, %cst_11 {dimension_numbers = #tpu.dot_dimension_numbers<[1], [0], [0], [1], [0, 0, 1, 1], [], []>} : vector<8x8xbf16>, vector<8x32xbf16>, vector<8x32xf32> -> vector<8x32xf32>
    %35 = arith.addf %15, %34 : vector<8x32xf32>
    %36 = vector.extract_strided_slice %9 {offsets = [0, 8], sizes = [8, 8], strides = [1, 1]} : vector<8x32xbf16> to vector<8x8xbf16>
    %37 = vector.extract_strided_slice %11 {offsets = [0, 8], sizes = [8, 8], strides = [1, 1]} : vector<8x32xbf16> to vector<8x8xbf16>
    %38 = vector.extract_strided_slice %13 {offsets = [0, 8], sizes = [8, 8], strides = [1, 1]} : vector<8x32xbf16> to vector<8x8xbf16>
    %cst_12 = arith.constant dense<0.000000e+00> : vector<8x8xf32>
    %39 = tpu.matmul %36, %37, %cst_12 {dimension_numbers = #tpu.dot_dimension_numbers<[1], [1], [0], [0], [0, 0, 1, 0], [], []>} : vector<8x8xbf16>, vector<8x8xbf16>, vector<8x8xf32> -> vector<8x8xf32>
    %cst_13 = arith.constant dense<0xFF800000> : vector<8xf32>
    %40 = vector.multi_reduction <maximumf>, %39, %cst_13 [1] : vector<8x8xf32> to vector<8xf32>
    %41 = vector.shape_cast %40 : vector<8xf32> to vector<8x1xf32>
    %42 = vector.broadcast %41 : vector<8x1xf32> to vector<8x8xf32>
    %43 = arith.subf %39, %42 : vector<8x8xf32>
    %44 = math.exp %43 : vector<8x8xf32>
    %cst_14 = arith.constant dense<0.000000e+00> : vector<8xf32>
    %45 = vector.multi_reduction <add>, %44, %cst_14 [1] : vector<8x8xf32> to vector<8xf32>
    %46 = vector.shape_cast %45 : vector<8xf32> to vector<8x1xf32>
    %47 = tpu.reciprocal %46 {approx = true} : vector<8x1xf32> -> vector<8x1xf32>
    %48 = vector.broadcast %47 : vector<8x1xf32> to vector<8x8xf32>
    %49 = arith.mulf %44, %48 : vector<8x8xf32>
    %50 = arith.truncf %49 : vector<8x8xf32> to vector<8x8xbf16>
    %cst_15 = arith.constant dense<0.000000e+00> : vector<8x8xf32>
    %51 = tpu.matmul %50, %38, %cst_15 {dimension_numbers = #tpu.dot_dimension_numbers<[1], [0], [0], [1], [0, 0, 1, 1], [], []>} : vector<8x8xbf16>, vector<8x8xbf16>, vector<8x8xf32> -> vector<8x8xf32>
    %52 = arith.truncf %51 : vector<8x8xf32> to vector<8x8xbf16>
    %53 = vector.extract_strided_slice %14 {offsets = [8, 0], sizes = [8, 32], strides = [1, 1]} : vector<32x32xbf16> to vector<8x32xbf16>
    %cst_16 = arith.constant dense<0.000000e+00> : vector<8x32xf32>
    %54 = tpu.matmul %52, %53, %cst_16 {dimension_numbers = #tpu.dot_dimension_numbers<[1], [0], [0], [1], [0, 0, 1, 1], [], []>} : vector<8x8xbf16>, vector<8x32xbf16>, vector<8x32xf32> -> vector<8x32xf32>
    %55 = arith.addf %35, %54 : vector<8x32xf32>
    %56 = vector.extract_strided_slice %9 {offsets = [0, 16], sizes = [8, 8], strides = [1, 1]} : vector<8x32xbf16> to vector<8x8xbf16>
    %57 = vector.extract_strided_slice %11 {offsets = [0, 16], sizes = [8, 8], strides = [1, 1]} : vector<8x32xbf16> to vector<8x8xbf16>
    %58 = vector.extract_strided_slice %13 {offsets = [0, 16], sizes = [8, 8], strides = [1, 1]} : vector<8x32xbf16> to vector<8x8xbf16>
    %cst_17 = arith.constant dense<0.000000e+00> : vector<8x8xf32>
    %59 = tpu.matmul %56, %57, %cst_17 {dimension_numbers = #tpu.dot_dimension_numbers<[1], [1], [0], [0], [0, 0, 1, 0], [], []>} : vector<8x8xbf16>, vector<8x8xbf16>, vector<8x8xf32> -> vector<8x8xf32>
    %cst_18 = arith.constant dense<0xFF800000> : vector<8xf32>
    %60 = vector.multi_reduction <maximumf>, %59, %cst_18 [1] : vector<8x8xf32> to vector<8xf32>
    %61 = vector.shape_cast %60 : vector<8xf32> to vector<8x1xf32>
    %62 = vector.broadcast %61 : vector<8x1xf32> to vector<8x8xf32>
    %63 = arith.subf %59, %62 : vector<8x8xf32>
    %64 = math.exp %63 : vector<8x8xf32>
    %cst_19 = arith.constant dense<0.000000e+00> : vector<8xf32>
    %65 = vector.multi_reduction <add>, %64, %cst_19 [1] : vector<8x8xf32> to vector<8xf32>
    %66 = vector.shape_cast %65 : vector<8xf32> to vector<8x1xf32>
    %67 = tpu.reciprocal %66 {approx = true} : vector<8x1xf32> -> vector<8x1xf32>
    %68 = vector.broadcast %67 : vector<8x1xf32> to vector<8x8xf32>
    %69 = arith.mulf %64, %68 : vector<8x8xf32>
    %70 = arith.truncf %69 : vector<8x8xf32> to vector<8x8xbf16>
    %cst_20 = arith.constant dense<0.000000e+00> : vector<8x8xf32>
    %71 = tpu.matmul %70, %58, %cst_20 {dimension_numbers = #tpu.dot_dimension_numbers<[1], [0], [0], [1], [0, 0, 1, 1], [], []>} : vector<8x8xbf16>, vector<8x8xbf16>, vector<8x8xf32> -> vector<8x8xf32>
    %72 = arith.truncf %71 : vector<8x8xf32> to vector<8x8xbf16>
    %73 = vector.extract_strided_slice %14 {offsets = [16, 0], sizes = [8, 32], strides = [1, 1]} : vector<32x32xbf16> to vector<8x32xbf16>
    %cst_21 = arith.constant dense<0.000000e+00> : vector<8x32xf32>
    %74 = tpu.matmul %72, %73, %cst_21 {dimension_numbers = #tpu.dot_dimension_numbers<[1], [0], [0], [1], [0, 0, 1, 1], [], []>} : vector<8x8xbf16>, vector<8x32xbf16>, vector<8x32xf32> -> vector<8x32xf32>
    %75 = arith.addf %55, %74 : vector<8x32xf32>
    %76 = vector.extract_strided_slice %9 {offsets = [0, 24], sizes = [8, 8], strides = [1, 1]} : vector<8x32xbf16> to vector<8x8xbf16>
    %77 = vector.extract_strided_slice %11 {offsets = [0, 24], sizes = [8, 8], strides = [1, 1]} : vector<8x32xbf16> to vector<8x8xbf16>
    %78 = vector.extract_strided_slice %13 {offsets = [0, 24], sizes = [8, 8], strides = [1, 1]} : vector<8x32xbf16> to vector<8x8xbf16>
    %cst_22 = arith.constant dense<0.000000e+00> : vector<8x8xf32>
    %79 = tpu.matmul %76, %77, %cst_22 {dimension_numbers = #tpu.dot_dimension_numbers<[1], [1], [0], [0], [0, 0, 1, 0], [], []>} : vector<8x8xbf16>, vector<8x8xbf16>, vector<8x8xf32> -> vector<8x8xf32>
    %cst_23 = arith.constant dense<0xFF800000> : vector<8xf32>
    %80 = vector.multi_reduction <maximumf>, %79, %cst_23 [1] : vector<8x8xf32> to vector<8xf32>
    %81 = vector.shape_cast %80 : vector<8xf32> to vector<8x1xf32>
    %82 = vector.broadcast %81 : vector<8x1xf32> to vector<8x8xf32>
    %83 = arith.subf %79, %82 : vector<8x8xf32>
    %84 = math.exp %83 : vector<8x8xf32>
    %cst_24 = arith.constant dense<0.000000e+00> : vector<8xf32>
    %85 = vector.multi_reduction <add>, %84, %cst_24 [1] : vector<8x8xf32> to vector<8xf32>
    %86 = vector.shape_cast %85 : vector<8xf32> to vector<8x1xf32>
    %87 = tpu.reciprocal %86 {approx = true} : vector<8x1xf32> -> vector<8x1xf32>
    %88 = vector.broadcast %87 : vector<8x1xf32> to vector<8x8xf32>
    %89 = arith.mulf %84, %88 : vector<8x8xf32>
    %90 = arith.truncf %89 : vector<8x8xf32> to vector<8x8xbf16>
    %cst_25 = arith.constant dense<0.000000e+00> : vector<8x8xf32>
    %91 = tpu.matmul %90, %78, %cst_25 {dimension_numbers = #tpu.dot_dimension_numbers<[1], [0], [0], [1], [0, 0, 1, 1], [], []>} : vector<8x8xbf16>, vector<8x8xbf16>, vector<8x8xf32> -> vector<8x8xf32>
    %92 = arith.truncf %91 : vector<8x8xf32> to vector<8x8xbf16>
    %93 = vector.extract_strided_slice %14 {offsets = [24, 0], sizes = [8, 32], strides = [1, 1]} : vector<32x32xbf16> to vector<8x32xbf16>
    %cst_26 = arith.constant dense<0.000000e+00> : vector<8x32xf32>
    %94 = tpu.matmul %92, %93, %cst_26 {dimension_numbers = #tpu.dot_dimension_numbers<[1], [0], [0], [1], [0, 0, 1, 1], [], []>} : vector<8x8xbf16>, vector<8x32xbf16>, vector<8x32xf32> -> vector<8x32xf32>
    %95 = arith.addf %75, %94 : vector<8x32xf32>
    %c0_27 = arith.constant 0 : index
    %c0_28 = arith.constant 0 : index
    %96 = vector.load %arg4[%c0_27, %c0_28] : memref<1x32xf32, #tpu.memory_space<vmem>>, vector<1x32xf32>
    %97 = vector.broadcast %96 : vector<1x32xf32> to vector<8x32xf32>
    %98 = arith.addf %95, %97 : vector<8x32xf32>
    %99 = vector.shape_cast %98 : vector<8x32xf32> to vector<1x8x32xf32>
    %c0_29 = arith.constant 0 : index
    %c0_30 = arith.constant 0 : index
    %c0_31 = arith.constant 0 : index
    %100 = vector.load %arg5[%c0_29, %c0_30, %c0_31] : memref<1x8x32xf32, #tpu.memory_space<vmem>>, vector<1x8x32xf32>
    tpu.vector_store %arg5[%c0_29, %c0_30, %c0_31], %99 {strides = array<i32>} : memref<1x8x32xf32, #tpu.memory_space<vmem>>, vector<1x8x32xf32>,
    return
  }
  func.func @transform_0(%arg0: i32) -> (i32, i32, i32) {
    %c0_i32 = arith.constant 0 : i32
    %c0_i32_0 = arith.constant 0 : i32
    %c0_i32_1 = arith.constant 0 : i32
    return %arg0, %c0_i32, %c0_i32_0 : i32, i32, i32
  }
  func.func @transform_1(%arg0: i32) -> (i32, i32) {
    %c0_i32 = arith.constant 0 : i32
    %c0_i32_0 = arith.constant 0 : i32
    %c0_i32_1 = arith.constant 0 : i32
    return %c0_i32, %c0_i32_0 : i32, i32
  }
  func.func @transform_2(%arg0: i32) -> (i32, i32) {
    %c0_i32 = arith.constant 0 : i32
    %c0_i32_0 = arith.constant 0 : i32
    %c0_i32_1 = arith.constant 0 : i32
    return %c0_i32, %c0_i32_0 : i32, i32
  }
  func.func @transform_3(%arg0: i32) -> (i32, i32) {
    %c0_i32 = arith.constant 0 : i32
    %c0_i32_0 = arith.constant 0 : i32
    %c0_i32_1 = arith.constant 0 : i32
    return %c0_i32, %c0_i32_0 : i32, i32
  }
  func.func @transform_4(%arg0: i32) -> (i32, i32, i32) {
    %c0_i32 = arith.constant 0 : i32
    %c0_i32_0 = arith.constant 0 : i32
    %c0_i32_1 = arith.constant 0 : i32
    return %arg0, %c0_i32, %c0_i32_0 : i32, i32, i32
  }
}

</mosaic_0001>

<llo_original>
// kernel: tpu_custom_call.1
$region0: #{tpu_custom_call.1}
  #allocation0 [shape = 'u32[]', space=smem, size = 0x4, offset = 0x4, fixed_abs, tag = 'smem constant byte address 0x4 - core index']
  #allocation1 [shape = 'u32[72,128]{1,0:T(1,128)}', space=vmem, size = 0x9000, scoped, tag = 'internal scratch']
  %s0 = inlined_call_operand.hbm [shape: f32[2,8,32], index: 0, kind: input, shape index: {}]
  %s1 = inlined_call_operand.hbm [shape: bf16[96,96], index: 1, kind: input, shape index: {}]
  %s2 = inlined_call_operand.hbm [shape: bf16[32,32], index: 2, kind: input, shape index: {}]
  %s3 = inlined_call_operand.vmem [shape: f32[1,32], index: 3, kind: input, shape index: {}]
  %s4 = inlined_call_operand.hbm [shape: f32[2,8,32], index: 4, kind: output, shape index: {}]
  %s5 = sld [smem:[#allocation0]]
  $region61: #{tpu_custom_call.1} parent=0
    _
  %s7 = ssub.s32 1, %s5
  %s8 = scalar_select 0, %s7, %s5
  $region1: #{tpu_custom_call.1} parent=0
    #allocation2 [shape = 'u8[8192]{0}', space=vmem, size = 0x2000, scoped, tag = 'input window, operand 0']
    #allocation3 [shape = 's32[2]{0}', space=sflag, size = 0x8, scoped, tag = 'scoped memory for tpu_custom_call.1']
    #allocation4 [shape = 's32[2]{0}', space=sflag, size = 0x8, scoped, tag = 'scoped memory for tpu_custom_call.1']
    #allocation5 [shape = 'u8[24576]{0}', space=vmem, size = 0x6000, scoped, tag = 'input window, operand 1, single buffered']
    #allocation6 [shape = 's32[1]{0}', space=sflag, size = 0x4, scoped, tag = 'scoped memory for tpu_custom_call.1']
    #allocation7 [shape = 'u8[8192]{0}', space=vmem, size = 0x2000, scoped, tag = 'input window, operand 2, single buffered']
    #allocation8 [shape = 'u8[8192]{0}', space=vmem, size = 0x2000, scoped, tag = 'output window, operand 0']
    %9 = vsyncpa [#allocation3], 0
    %s10 = scalar_lea.sflag [#allocation3], 1
    %11 = vsyncpa %s10, 0
    %12 = vsyncpa [#allocation6], 0
    %13 = vsyncpa [#allocation4], 0
    %s14 = scalar_lea.sflag [#allocation4], 1
    %15 = vsyncpa %s14, 0
    loop: start=0, step=1, limit=4
    $region2: #{tpu_custom_call.1} parent=1 // loop_pre_header
      _
    $region3: #{tpu_custom_call.1} parent=1 // loop_header
      %s17 = sphi 0, %s21
      %p18 = scmp.ge.s32.totalorder %s17, 4
      %s27 = sphi 0, %s29
      %s30 = sphi 0, %s27
      %s31 = sphi 0, %s30
      %s47 = sphi 0, %s31
      %s51 = sphi 0, %s51
      %s53 = sphi 0, %s51
      %s54 = sphi 0, %s53
      %s68 = sphi 0, %s54
      %s72 = sphi 0, %s72
      %s74 = sphi 0, %s72
      %s75 = sphi 0, %s74
      %s89 = sphi 0, %s75
      %s93 = sphi 0, %s93
      %s95 = sphi 0, %s93
      %s96 = sphi 0, %s95
      %s110 = sphi 0, %s96
      %s116 = sphi 0, %s118
      %s119 = sphi 0, %s116
      %s120 = sphi 0, %s119
      %s136 = sphi 0, %s120
    $region4: #{tpu_custom_call.1} parent=1 // loop_header_branch
      %20 = sbr.rel (%p18) target = $region8
    $region5: #{tpu_custom_call.1} parent=1 // loop_body
      %s22 = ssub.s32 %s17, 1
      %s23 = ssub.s32 %s17, 2
      %s24 = sadd.s32 %s17, 1
      %s25 = ssub.s32 %s17, %s24
      %p26 = scmp.eq.s32.totalorder %s25, 0
      %s28 = sadd.s32 %s27, 1
      %s29 = scalar_select %p26, %s27, %s28
      %p32 = pneg %p26
      %p33 = scmp.eq.s32.totalorder %s17, 1
      %p34 = por %p32, %p33
      %p35 = scmp.ne.s32.totalorder %s27, %s30
      %p36 = scmp.eq.s32.totalorder %s17, 0
      %p37 = por %p35, %p36
      %p38 = scmp.ne.s32.totalorder %s27, %s30
      %p39 = scmp.eq.s32.totalorder %s22, 1
      %p40 = por %p38, %p39
      %p41 = scmp.ne.s32.totalorder %s30, %s31
      %p42 = scmp.eq.s32.totalorder %s22, 0
      %p43 = por %p41, %p42
      %p44 = scmp.ne.s32.totalorder %s30, %s31
      %p45 = scmp.eq.s32.totalorder %s23, 1
      %p46 = por %p44, %p45
      %p48 = scmp.ne.s32.totalorder %s31, %s47
      %p49 = scmp.eq.s32.totalorder %s23, 0
      %p50 = por %p48, %p49
      %s52 = sadd.s32 %s51, 1
      %p55 = scmp.eq.s32.totalorder %s17, 1
      %p56 = scmp.ne.s32.totalorder %s51, %s53
      %p57 = scmp.eq.s32.totalorder %s17, 0
      %p58 = por %p56, %p57
      %p59 = scmp.ne.s32.totalorder %s51, %s53
      %p60 = scmp.eq.s32.totalorder %s22, 1
      %p61 = por %p59, %p60
      %p62 = scmp.ne.s32.totalorder %s53, %s54
      %p63 = scmp.eq.s32.totalorder %s22, 0
      %p64 = por %p62, %p63
      %p65 = scmp.ne.s32.totalorder %s53, %s54
      %p66 = scmp.eq.s32.totalorder %s23, 1
      %p67 = por %p65, %p66
      %p69 = scmp.ne.s32.totalorder %s54, %s68
      %p70 = scmp.eq.s32.totalorder %s23, 0
      %p71 = por %p69, %p70
      %s73 = sadd.s32 %s72, 1
      %p76 = scmp.eq.s32.totalorder %s17, 1
      %p77 = scmp.ne.s32.totalorder %s72, %s74
      %p78 = scmp.eq.s32.totalorder %s17, 0
      %p79 = por %p77, %p78
      %p80 = scmp.ne.s32.totalorder %s72, %s74
      %p81 = scmp.eq.s32.totalorder %s22, 1
      %p82 = por %p80, %p81
      %p83 = scmp.ne.s32.totalorder %s74, %s75
      %p84 = scmp.eq.s32.totalorder %s22, 0
      %p85 = por %p83, %p84
      %p86 = scmp.ne.s32.totalorder %s74, %s75
      %p87 = scmp.eq.s32.totalorder %s23, 1
      %p88 = por %p86, %p87
      %p90 = scmp.ne.s32.totalorder %s75, %s89
      %p91 = scmp.eq.s32.totalorder %s23, 0
      %p92 = por %p90, %p91
      %s94 = sadd.s32 %s93, 1
      %p97 = scmp.eq.s32.totalorder %s17, 1
      %p98 = scmp.ne.s32.totalorder %s93, %s95
      %p99 = scmp.eq.s32.totalorder %s17, 0
      %p100 = por %p98, %p99
      %p101 = scmp.ne.s32.totalorder %s93, %s95
      %p102 = scmp.eq.s32.totalorder %s22, 1
      %p103 = por %p101, %p102
      %p104 = scmp.ne.s32.totalorder %s95, %s96
      %p105 = scmp.eq.s32.totalorder %s22, 0
      %p106 = por %p104, %p105
      %p107 = scmp.ne.s32.totalorder %s95, %s96
      %p108 = scmp.eq.s32.totalorder %s23, 1
      %p109 = por %p107, %p108
      %p111 = scmp.ne.s32.totalorder %s96, %s110
      %p112 = scmp.eq.s32.totalorder %s23, 0
      %p113 = por %p111, %p112
      %s114 = ssub.s32 %s17, %s24
      %p115 = scmp.eq.s32.totalorder %s114, 0
      %s117 = sadd.s32 %s116, 1
      %s118 = scalar_select %p115, %s116, %s117
      %p121 = pneg %p115
      %p122 = scmp.eq.s32.totalorder %s17, 1
      %p123 = por %p121, %p122
      %p124 = scmp.ne.s32.totalorder %s116, %s119
      %p125 = scmp.eq.s32.totalorder %s17, 0
      %p126 = por %p124, %p125
      %p127 = scmp.ne.s32.totalorder %s116, %s119
      %p128 = scmp.eq.s32.totalorder %s22, 1
      %p129 = por %p127, %p128
      %p130 = scmp.ne.s32.totalorder %s119, %s120
      %p131 = scmp.eq.s32.totalorder %s22, 0
      %p132 = por %p130, %p131
      %p133 = scmp.ne.s32.totalorder %s119, %s120
      %p134 = scmp.eq.s32.totalorder %s23, 1
      %p135 = por %p133, %p134
      %p137 = scmp.ne.s32.totalorder %s120, %s136
      %p138 = scmp.eq.s32.totalorder %s23, 0
      %p139 = por %p137, %p138
      %p140 = scmp.le.s32.totalorder 1, %s17
      %p141 = scmp.lt.s32.totalorder %s17, 3
      %p142 = pnand %p140, %p141
      %p143 = pneg %p142
      // Predicated region
      $region9: #{tpu_custom_call.1} parent=5 // pred_check
        _
      $region10: #{tpu_custom_call.1} parent=5 // pred_check_branch
        %145 = sbr.rel (%p142) target = $region12
      $region11: #{tpu_custom_call.1} parent=5 // pred_region
        %s146 = ssub.s32 %s17, 1
        // Predicated region
        $region13: #{tpu_custom_call.1} parent=11 // pred_check
          %p147 = pneg %p64
        $region14: #{tpu_custom_call.1} parent=11 // pred_check_branch
          %149 = sbr.rel (%p147) target = $region16
        $region15: #{tpu_custom_call.1} parent=11 // pred_region
          %151 = vsyncadd [#allocation6], 0
          %s152 = sshll.u32 %s1, 4
          %s153 = int_to_ptr.hbm [resolvable:$true] %s152
          %s154 = sshll.u32 [#allocation5], 4
          %s155 = int_to_ptr.vmem [resolvable:$true] %s154
          %160 = dma.hbm_to_vmem [thread:$0]  %s153, 768, %s155, [#allocation6], 64, 64, 4
        $region16: #{tpu_custom_call.1} parent=11 // pred_fallthru
          _
        // Predicated region
        $region17: #{tpu_custom_call.1} parent=11 // pred_check
          %p161 = pneg %p85
        $region18: #{tpu_custom_call.1} parent=11 // pred_check_branch
          %163 = sbr.rel (%p161) target = $region20
        $region19: #{tpu_custom_call.1} parent=11 // pred_region
          %165 = vsyncadd [#allocation6], 0
          %s166 = sshll.u32 %s2, 4
          %s167 = int_to_ptr.hbm [resolvable:$true] %s166
          %s168 = sshll.u32 [#allocation7], 4
          %s169 = int_to_ptr.vmem [resolvable:$true] %s168
          %174 = dma.hbm_to_vmem [thread:$0]  %s167, 256, %s169, [#allocation6], 64, 64, 4
        $region20: #{tpu_custom_call.1} parent=11 // pred_fallthru
          _
        // Predicated region
        $region21: #{tpu_custom_call.1} parent=11 // pred_check
          %p175 = pneg %p106
        $region22: #{tpu_custom_call.1} parent=11 // pred_check_branch
          %177 = sbr.rel (%p175) target = $region24
        $region23: #{tpu_custom_call.1} parent=11 // pred_region
          _
        $region24: #{tpu_custom_call.1} parent=11 // pred_fallthru
          _
      $region12: #{tpu_custom_call.1} parent=5 // pred_fallthru
        _
      %p178 = scmp.lt.s32.totalorder %s17, 2
      // Predicated region
      $region25: #{tpu_custom_call.1} parent=5 // pred_check
        %p179 = pneg %p178
      $region26: #{tpu_custom_call.1} parent=5 // pred_check_branch
        %181 = sbr.rel (%p179) target = $region28
      $region27: #{tpu_custom_call.1} parent=5 // pred_region
        // Predicated region
        $region29: #{tpu_custom_call.1} parent=27 // pred_check
          %p182 = pneg %p37
        $region30: #{tpu_custom_call.1} parent=27 // pred_check_branch
          %184 = sbr.rel (%p182) target = $region32
        $region31: #{tpu_custom_call.1} parent=27 // pred_region
          %s185 = sand.u32 %s27, 1
          %s186 = scalar_lea.sflag [#allocation3], %s185
          %s187 = sand.u32 %s27, 1
          %s188 = smul.addr %s187, 8
          %s189 = scalar_lea.vmem [#allocation2], %s188
          %191 = vsyncadd %s186, 0
          %s192 = smul.addr %s17, 8
          %s193 = scalar_lea.hbm %s0, %s192
          %s195 = sshll.u32 %s193, 4
          %s196 = int_to_ptr.hbm [resolvable:$true] %s195
          %s197 = sshll.u32 %s189, 4
          %s198 = int_to_ptr.vmem [resolvable:$true] %s197
          %200 = dma.hbm_to_vmem [thread:$0]  %s196, 128, %s198, %s186
        $region32: #{tpu_custom_call.1} parent=27 // pred_fallthru
          _
      $region28: #{tpu_custom_call.1} parent=5 // pred_fallthru
        _
      %p201 = scmp.le.s32.totalorder 1, %s17
      %p202 = scmp.lt.s32.totalorder %s17, 3
      %p203 = pnand %p201, %p202
      %p204 = pneg %p203
      // Predicated region
      $region33: #{tpu_custom_call.1} parent=5 // pred_check
        _
      $region34: #{tpu_custom_call.1} parent=5 // pred_check_branch
        %206 = sbr.rel (%p203) target = $region36
      $region35: #{tpu_custom_call.1} parent=5 // pred_region
        %s207 = ssub.s32 %s17, 1
        %s208 = sand.u32 %s30, 1
        %s209 = scalar_lea.sflag [#allocation3], %s208
        %s210 = sand.u32 %s30, 1
        %s211 = smul.addr %s210, 8
        %s212 = scalar_lea.vmem [#allocation2], %s211
        // Predicated region
        $region37: #{tpu_custom_call.1} parent=35 // pred_check
          %p213 = pneg %p43
        $region38: #{tpu_custom_call.1} parent=35 // pred_check_branch
          %215 = sbr.rel (%p213) target = $region40
        $region39: #{tpu_custom_call.1} parent=35 // pred_region
          %217 = dma.done %s209, 128
        $region40: #{tpu_custom_call.1} parent=35 // pred_fallthru
          _
        // Predicated region
        $region41: #{tpu_custom_call.1} parent=35 // pred_check
          %p218 = pneg %p64
        $region42: #{tpu_custom_call.1} parent=35 // pred_check_branch
          %220 = sbr.rel (%p218) target = $region44
        $region43: #{tpu_custom_call.1} parent=35 // pred_region
          %222 = dma.done [#allocation6], 768
        $region44: #{tpu_custom_call.1} parent=35 // pred_fallthru
          _
        // Predicated region
        $region45: #{tpu_custom_call.1} parent=35 // pred_check
          %p223 = pneg %p85
        $region46: #{tpu_custom_call.1} parent=35 // pred_check_branch
          %225 = sbr.rel (%p223) target = $region48
        $region47: #{tpu_custom_call.1} parent=35 // pred_region
          %227 = dma.done [#allocation6], 256
        $region48: #{tpu_custom_call.1} parent=35 // pred_fallthru
          _
        %s228 = sand.u32 %s30, 1
        %s229 = scalar_lea.sflag [#allocation3], %s228
        %s230 = sand.u32 %s30, 1
        %s231 = smul.addr %s230, 8
        %s232 = scalar_lea.vmem [#allocation2], %s231
        %p233 = pneg %p43
        %p234 = pneg %p40
        %p235 = pneg %p64
        %p236 = pneg %p61
        %p237 = pneg %p85
        %p238 = pneg %p82
        %p239 = pneg %p106
        %p240 = pneg %p103
        %p241 = pneg %p132
        %p242 = pneg %p129
        %s243 = sand.u32 %s119, 1
        %s244 = scalar_lea.sflag [#allocation4], %s243
        %s245 = sand.u32 %s119, 1
        %s246 = smul.addr %s245, 8
        %s247 = scalar_lea.vmem [#allocation8], %s246
        %v249 = vld [vmem:[%s212] sm:$0xff]
        %v250 = vrot.slane %v249, 7
        %v251 = vrot.slane %v249, 1
        %253 = vrot.lane.b32.xlu0 %v249, 32
        %v254 = vpop.permute.xlu0 %253
        %257 = vrot.lane.b32.xlu0 %v251, 64
        %v258 = vpop.permute.xlu0 %257
        %vm260 = vcmask 261120
        %v261 = vsel %vm260, %v250, %v254
        %vm262 = vcmask 523264
        %v263 = vsel %vm262, %v261, %v258
        %v264 = vpack.c.bf16 %v263, %v263
        %v265 = vld [vmem:[#allocation5] sm:$0xf]
        %v266 = vld [vmem:[#allocation5 + $0x4] sm:$0xf]
        %v267 = vld [vmem:[#allocation5 + $0x8] sm:$0xf]
        %v268 = vld [vmem:[#allocation5 + $0xc] sm:$0xf]
        %v269 = vld [vmem:[#allocation5 + $0x10] sm:$0xf]
        %v270 = vld [vmem:[#allocation5 + $0x14] sm:$0xf]
        %v271 = vld [vmem:[#allocation5 + $0x18] sm:$0xf]
        %v272 = vld [vmem:[#allocation5 + $0x1c] sm:$0xf]
        %v273 = vld [vmem:[#allocation5 + $0x20] sm:$0xf]
        %v274 = vld [vmem:[#allocation5 + $0x24] sm:$0xf]
        %v275 = vld [vmem:[#allocation5 + $0x28] sm:$0xf]
        %v276 = vld [vmem:[#allocation5 + $0x2c] sm:$0xf]
        %v289 = vunpack.c.l.b16 %v265
        %v290 = vunpack.c.l.b16 %v266
        %v291 = vunpack.c.l.b16 %v267
        %v292 = vunpack.c.l.b16 %v268
        %v293 = vunpack.c.l.b16 %v269
        %v294 = vunpack.c.l.b16 %v270
        %v295 = vunpack.c.l.b16 %v271
        %v296 = vunpack.c.l.b16 %v272
        %v297 = vunpack.c.l.b16 %v273
        %v298 = vunpack.c.l.b16 %v274
        %v299 = vunpack.c.l.b16 %v275
        %v300 = vunpack.c.l.b16 %v276
        %v301 = vpack.c.b16 %v290, %v289
        %v302 = vpack.c.b16 %v292, %v291
        %v303 = vpack.c.b16 %v294, %v293
        %v304 = vpack.c.b16 %v296, %v295
        %v305 = vpack.c.b16 %v298, %v297
        %v306 = vpack.c.b16 %v300, %v299
        %vm313 = vcmask 785408
        %v315 = vsel %vm313, %v264, 0
        %317 = vmatpush.bf16.msra.mxu0 0
        %318 = vmatpush.bf16.msra.mxu0 0
        %319 = vmatpush.bf16.msra.mxu0 %v306
        %320 = vmatpush.bf16.msra.mxu0 %v305
        %321 = vmatpush.bf16.msra.mxu0 %v304
        %322 = vmatpush.bf16.msra.mxu0 %v303
        %323 = vmatpush.bf16.msra.mxu0 %v302
        %324 = vmatpush.bf16.msra.mxu0 %v301
        %325 = vmatmul.bf16.gmra.mxu0 %v315
        %v326 = vpop.f32.mrf.mxu0
        %v327 = vadd.f32 0.0, %v326
        %v328 = vpop.f32.mrf.mxu0
        %329 = vdwg.mxu0
        %v330 = vpack.c.bf16 %v327, %v327
        %v331 = vld [vmem:[#allocation7] sm:$0xf]
        %v332 = vld [vmem:[#allocation7 + $0x4] sm:$0xf]
        %v333 = vld [vmem:[#allocation7 + $0x8] sm:$0xf]
        %v334 = vld [vmem:[#allocation7 + $0xc] sm:$0xf]
        %v336 = vunpack.c.l.b16 %v330
        %v337 = vpack.c.b16 %v336, %v336
        %338 = vrot.lane.b32.xlu0 %v337, 96
        %v339 = vpop.permute.xlu0 %338
        %vm340 = vcmask 64512
        %v342 = vsel %vm340, %v330, 0
        %v345 = vsel %vm340, %v339, 0
        %347 = vmatpush.bf16.xpose.msra.mxu0 0
        %348 = vmatpush.bf16.xpose.msra.mxu0 0
        %349 = vmatpush.bf16.xpose.msra.mxu0 0
        %350 = vmatpush.bf16.xpose.msra.mxu0 0
        %351 = vmatpush.bf16.xpose.msra.mxu0 0
        %352 = vmatpush.bf16.xpose.msra.mxu0 0
        %353 = vmatpush.bf16.xpose.msra.mxu0 0
        %354 = vmatpush.bf16.xpose.msra.mxu0 %v345
        %355 = vmatmul.bf16.gmra.mxu0 %v342
        %v356 = vpop.f32.mrf.mxu0
        %v357 = vadd.f32 0.0, %v356
        %v358 = vpop.f32.mrf.mxu0
        %359 = vdwg.mxu0
        %v360 = vsel %vm340, %v357, -inf
        %361 = vmax.xlane.f32.xlu0 %v360
        %v362 = vpop.xlane.xlu0 %361
        %v363 = vsub.f32 %v357, %v362
        %v364 = vmul.f32 %v363, 1.442695
        %v365 = vpow.pop %v364
        %v366 = vsel %vm340, %v365, 0.0
        %367 = vadd.xlane.f32.xlu0 %v366
        %v368 = vpop.xlane.xlu0 %367
        %v369 = vrcp.pop %v368
        %v370 = vmul.f32 %v365, %v369
        %v371 = vpack.c.bf16 %v370, %v370
        %372 = vrot.lane.b32.xlu0 %v337, 64
        %v373 = vpop.permute.xlu0 %372
        %v375 = vsel %vm340, %v371, 0
        %vm377 = vcmask 1043456
        %v379 = vsel %vm377, %v373, 0
        %381 = vmatpush.bf16.msra.mxu0 0
        %382 = vmatpush.bf16.msra.mxu0 0
        %383 = vmatpush.bf16.msra.mxu0 0
        %384 = vmatpush.bf16.msra.mxu0 0
        %385 = vmatpush.bf16.msra.mxu0 0
        %386 = vmatpush.bf16.msra.mxu0 0
        %387 = vmatpush.bf16.msra.mxu0 0
        %388 = vmatpush.bf16.msra.mxu0 %v379
        %389 = vmatmul.bf16.gmra.mxu0 %v375
        %v390 = vpop.f32.mrf.mxu0
        %v391 = vadd.f32 0.0, %v390
        %v392 = vpop.f32.mrf.mxu0
        %393 = vdwg.mxu0
        %v394 = vpack.c.bf16 %v391, %v391
        %395 = vrot.lane.b32.xlu0 %v337, 120
        %v396 = vpop.permute.xlu0 %395
        %397 = vrot.lane.b32.xlu0 %v337, 88
        %v398 = vpop.permute.xlu0 %397
        %v400 = vsel %vm340, %v396, 0
        %v403 = vsel %vm340, %v398, 0
        %405 = vmatpush.bf16.xpose.msra.mxu0 0
        %406 = vmatpush.bf16.xpose.msra.mxu0 0
        %407 = vmatpush.bf16.xpose.msra.mxu0 0
        %408 = vmatpush.bf16.xpose.msra.mxu0 0
        %409 = vmatpush.bf16.xpose.msra.mxu0 0
        %410 = vmatpush.bf16.xpose.msra.mxu0 0
        %411 = vmatpush.bf16.xpose.msra.mxu0 0
        %412 = vmatpush.bf16.xpose.msra.mxu0 %v403
        %413 = vmatmul.bf16.gmra.mxu0 %v400
        %v414 = vpop.f32.mrf.mxu0
        %v415 = vadd.f32 0.0, %v414
        %v416 = vpop.f32.mrf.mxu0
        %417 = vdwg.mxu0
        %v418 = vsel %vm340, %v415, -inf
        %419 = vmax.xlane.f32.xlu0 %v418
        %v420 = vpop.xlane.xlu0 %419
        %v421 = vsub.f32 %v415, %v420
        %v422 = vmul.f32 %v421, 1.442695
        %v423 = vpow.pop %v422
        %v424 = vsel %vm340, %v423, 0.0
        %425 = vadd.xlane.f32.xlu0 %v424
        %v426 = vpop.xlane.xlu0 %425
        %v427 = vrcp.pop %v426
        %v428 = vmul.f32 %v423, %v427
        %v429 = vpack.c.bf16 %v428, %v428
        %430 = vrot.lane.b32.xlu0 %v337, 56
        %v431 = vpop.permute.xlu0 %430
        %v433 = vsel %vm340, %v429, 0
        %v436 = vsel %vm377, %v431, 0
        %438 = vmatpush.bf16.msra.mxu0 0
        %439 = vmatpush.bf16.msra.mxu0 0
        %440 = vmatpush.bf16.msra.mxu0 0
        %441 = vmatpush.bf16.msra.mxu0 0
        %442 = vmatpush.bf16.msra.mxu0 0
        %443 = vmatpush.bf16.msra.mxu0 0
        %444 = vmatpush.bf16.msra.mxu0 0
        %445 = vmatpush.bf16.msra.mxu0 %v436
        %446 = vmatmul.bf16.gmra.mxu0 %v433
        %v447 = vpop.f32.mrf.mxu0
        %v448 = vadd.f32 0.0, %v447
        %v449 = vpop.f32.mrf.mxu0
        %450 = vdwg.mxu0
        %v451 = vpack.c.bf16 %v448, %v448
        %v453 = vsel %vm340, %v451, 0
        %v456 = vsel %vm377, %v332, 0
        %458 = vmatpush.bf16.msra.mxu0 0
        %459 = vmatpush.bf16.msra.mxu0 0
        %460 = vmatpush.bf16.msra.mxu0 0
        %461 = vmatpush.bf16.msra.mxu0 0
        %462 = vmatpush.bf16.msra.mxu0 0
        %463 = vmatpush.bf16.msra.mxu0 0
        %464 = vmatpush.bf16.msra.mxu0 0
        %465 = vmatpush.bf16.msra.mxu0 %v456
        %466 = vmatmul.bf16.gmra.mxu0 %v453
        %v467 = vpop.f32.mrf.mxu0
        %v468 = vadd.f32 0.0, %v467
        %v469 = vpop.f32.mrf.mxu0
        %470 = vdwg.mxu0
        %v472 = vsel %vm340, %v394, 0
        %v475 = vsel %vm377, %v331, 0
        %477 = vmatpush.bf16.msra.mxu0 0
        %478 = vmatpush.bf16.msra.mxu0 0
        %479 = vmatpush.bf16.msra.mxu0 0
        %480 = vmatpush.bf16.msra.mxu0 0
        %481 = vmatpush.bf16.msra.mxu0 0
        %482 = vmatpush.bf16.msra.mxu0 0
        %483 = vmatpush.bf16.msra.mxu0 0
        %484 = vmatpush.bf16.msra.mxu0 %v475
        %485 = vmatmul.bf16.gmra.mxu0 %v472
        %v486 = vpop.f32.mrf.mxu0
        %v487 = vadd.f32 %v468, %v486
        %v488 = vpop.f32.mrf.mxu0
        %489 = vdwg.mxu0
        %490 = vrot.lane.b32.xlu0 %v337, 112
        %v491 = vpop.permute.xlu0 %490
        %492 = vrot.lane.b32.xlu0 %v337, 80
        %v493 = vpop.permute.xlu0 %492
        %v495 = vsel %vm340, %v491, 0
        %v498 = vsel %vm340, %v493, 0
        %500 = vmatpush.bf16.xpose.msra.mxu0 0
        %501 = vmatpush.bf16.xpose.msra.mxu0 0
        %502 = vmatpush.bf16.xpose.msra.mxu0 0
        %503 = vmatpush.bf16.xpose.msra.mxu0 0
        %504 = vmatpush.bf16.xpose.msra.mxu0 0
        %505 = vmatpush.bf16.xpose.msra.mxu0 0
        %506 = vmatpush.bf16.xpose.msra.mxu0 0
        %507 = vmatpush.bf16.xpose.msra.mxu0 %v498
        %508 = vmatmul.bf16.gmra.mxu0 %v495
        %v509 = vpop.f32.mrf.mxu0
        %v510 = vadd.f32 0.0, %v509
        %v511 = vpop.f32.mrf.mxu0
        %512 = vdwg.mxu0
        %v513 = vsel %vm340, %v510, -inf
        %514 = vmax.xlane.f32.xlu0 %v513
        %v515 = vpop.xlane.xlu0 %514
        %v516 = vsub.f32 %v510, %v515
        %v517 = vmul.f32 %v516, 1.442695
        %v518 = vpow.pop %v517
        %v519 = vsel %vm340, %v518, 0.0
        %520 = vadd.xlane.f32.xlu0 %v519
        %v521 = vpop.xlane.xlu0 %520
        %v522 = vrcp.pop %v521
        %v523 = vmul.f32 %v518, %v522
        %v524 = vpack.c.bf16 %v523, %v523
        %525 = vrot.lane.b32.xlu0 %v337, 48
        %v526 = vpop.permute.xlu0 %525
        %v528 = vsel %vm340, %v524, 0
        %v531 = vsel %vm377, %v526, 0
        %533 = vmatpush.bf16.msra.mxu0 0
        %534 = vmatpush.bf16.msra.mxu0 0
        %535 = vmatpush.bf16.msra.mxu0 0
        %536 = vmatpush.bf16.msra.mxu0 0
        %537 = vmatpush.bf16.msra.mxu0 0
        %538 = vmatpush.bf16.msra.mxu0 0
        %539 = vmatpush.bf16.msra.mxu0 0
        %540 = vmatpush.bf16.msra.mxu0 %v531
        %541 = vmatmul.bf16.gmra.mxu0 %v528
        %v542 = vpop.f32.mrf.mxu0
        %v543 = vadd.f32 0.0, %v542
        %v544 = vpop.f32.mrf.mxu0
        %545 = vdwg.mxu0
        %v546 = vpack.c.bf16 %v543, %v543
        %v548 = vsel %vm340, %v546, 0
        %v551 = vsel %vm377, %v333, 0
        %553 = vmatpush.bf16.msra.mxu0 0
        %554 = vmatpush.bf16.msra.mxu0 0
        %555 = vmatpush.bf16.msra.mxu0 0
        %556 = vmatpush.bf16.msra.mxu0 0
        %557 = vmatpush.bf16.msra.mxu0 0
        %558 = vmatpush.bf16.msra.mxu0 0
        %559 = vmatpush.bf16.msra.mxu0 0
        %560 = vmatpush.bf16.msra.mxu0 %v551
        %561 = vmatmul.bf16.gmra.mxu0 %v548
        %v562 = vpop.f32.mrf.mxu0
        %v563 = vadd.f32 0.0, %v562
        %v564 = vpop.f32.mrf.mxu0
        %565 = vdwg.mxu0
        %v566 = vadd.f32 %v487, %v563
        %567 = vrot.lane.b32.xlu0 %v337, 104
        %v568 = vpop.permute.xlu0 %567
        %569 = vrot.lane.b32.xlu0 %v337, 72
        %v570 = vpop.permute.xlu0 %569
        %v572 = vsel %vm340, %v568, 0
        %v575 = vsel %vm340, %v570, 0
        %577 = vmatpush.bf16.xpose.msra.mxu0 0
        %578 = vmatpush.bf16.xpose.msra.mxu0 0
        %579 = vmatpush.bf16.xpose.msra.mxu0 0
        %580 = vmatpush.bf16.xpose.msra.mxu0 0
        %581 = vmatpush.bf16.xpose.msra.mxu0 0
        %582 = vmatpush.bf16.xpose.msra.mxu0 0
        %583 = vmatpush.bf16.xpose.msra.mxu0 0
        %584 = vmatpush.bf16.xpose.msra.mxu0 %v575
        %585 = vmatmul.bf16.gmra.mxu0 %v572
        %v586 = vpop.f32.mrf.mxu0
        %v587 = vadd.f32 0.0, %v586
        %v588 = vpop.f32.mrf.mxu0
        %589 = vdwg.mxu0
        %v590 = vsel %vm340, %v587, -inf
        %591 = vmax.xlane.f32.xlu0 %v590
        %v592 = vpop.xlane.xlu0 %591
        %v593 = vsub.f32 %v587, %v592
        %v594 = vmul.f32 %v593, 1.442695
        %v595 = vpow.pop %v594
        %v596 = vsel %vm340, %v595, 0.0
        %597 = vadd.xlane.f32.xlu0 %v596
        %v598 = vpop.xlane.xlu0 %597
        %v599 = vrcp.pop %v598
        %v600 = vmul.f32 %v595, %v599
        %v601 = vpack.c.bf16 %v600, %v600
        %602 = vrot.lane.b32.xlu0 %v337, 40
        %v603 = vpop.permute.xlu0 %602
        %v605 = vsel %vm340, %v601, 0
        %v608 = vsel %vm377, %v603, 0
        %610 = vmatpush.bf16.msra.mxu0 0
        %611 = vmatpush.bf16.msra.mxu0 0
        %612 = vmatpush.bf16.msra.mxu0 0
        %613 = vmatpush.bf16.msra.mxu0 0
        %614 = vmatpush.bf16.msra.mxu0 0
        %615 = vmatpush.bf16.msra.mxu0 0
        %616 = vmatpush.bf16.msra.mxu0 0
        %617 = vmatpush.bf16.msra.mxu0 %v608
        %618 = vmatmul.bf16.gmra.mxu0 %v605
        %v619 = vpop.f32.mrf.mxu0
        %v620 = vadd.f32 0.0, %v619
        %v621 = vpop.f32.mrf.mxu0
        %622 = vdwg.mxu0
        %v623 = vpack.c.bf16 %v620, %v620
        %v625 = vsel %vm340, %v623, 0
        %v628 = vsel %vm377, %v334, 0
        %630 = vmatpush.bf16.msra.mxu0 0
        %631 = vmatpush.bf16.msra.mxu0 0
        %632 = vmatpush.bf16.msra.mxu0 0
        %633 = vmatpush.bf16.msra.mxu0 0
        %634 = vmatpush.bf16.msra.mxu0 0
        %635 = vmatpush.bf16.msra.mxu0 0
        %636 = vmatpush.bf16.msra.mxu0 0
        %637 = vmatpush.bf16.msra.mxu0 %v628
        %638 = vmatmul.bf16.gmra.mxu0 %v625
        %v639 = vpop.f32.mrf.mxu0
        %v640 = vadd.f32 0.0, %v639
        %v641 = vpop.f32.mrf.mxu0
        %642 = vdwg.mxu0
        %v643 = vadd.f32 %v566, %v640
        %v644 = vld [vmem:[%s3] sm:$0x1]
        %v646 = vperm.slane %v644, 0
        %v648 = vadd.f32 %v643, %v646
        %649 = vst.msk [vmem:[%s247] sm:$0xff] %vm260, %v648
        %s650 = sand.u32 %s119, 1
        %s651 = scalar_lea.sflag [#allocation4], %s650
        %s652 = sand.u32 %s119, 1
        %s653 = smul.addr %s652, 8
        %s654 = scalar_lea.vmem [#allocation8], %s653
        // Predicated region
        $region49: #{tpu_custom_call.1} parent=35 // pred_check
          %p655 = pneg %p129
        $region50: #{tpu_custom_call.1} parent=35 // pred_check_branch
          %657 = sbr.rel (%p655) target = $region52
        $region51: #{tpu_custom_call.1} parent=35 // pred_region
          %659 = vsyncadd %s651, 0
          %s660 = smul.addr %s22, 8
          %s661 = scalar_lea.hbm %s4, %s660
          %s663 = sshll.u32 %s654, 4
          %s664 = int_to_ptr.vmem [resolvable:$true] %s663
          %s665 = sshll.u32 %s661, 4
          %s666 = int_to_ptr.hbm [resolvable:$true] %s665
          %668 = dma.vmem_to_hbm [thread:$0]  %s664, 128, %s666, %s651
        $region52: #{tpu_custom_call.1} parent=35 // pred_fallthru
          _
      $region36: #{tpu_custom_call.1} parent=5 // pred_fallthru
        _
      %p669 = scmp.le.s32.totalorder 2, %s17
      // Predicated region
      $region53: #{tpu_custom_call.1} parent=5 // pred_check
        %p670 = pneg %p669
      $region54: #{tpu_custom_call.1} parent=5 // pred_check_branch
        %672 = sbr.rel (%p670) target = $region56
      $region55: #{tpu_custom_call.1} parent=5 // pred_region
        %s673 = ssub.s32 %s17, 2
        // Predicated region
        $region57: #{tpu_custom_call.1} parent=55 // pred_check
          %p674 = pneg %p135
        $region58: #{tpu_custom_call.1} parent=55 // pred_check_branch
          %676 = sbr.rel (%p674) target = $region60
        $region59: #{tpu_custom_call.1} parent=55 // pred_region
          %s677 = sand.u32 %s120, 1
          %s678 = scalar_lea.sflag [#allocation4], %s677
          %s679 = sand.u32 %s120, 1
          %s680 = smul.addr %s679, 8
          %s681 = scalar_lea.vmem [#allocation8], %s680
          %683 = dma.done %s678, 128
        $region60: #{tpu_custom_call.1} parent=55 // pred_fallthru
          _
      $region56: #{tpu_custom_call.1} parent=5 // pred_fallthru
        _
    $region6: #{tpu_custom_call.1} parent=1 // loop_footer
      %s21 = sadd.s32 1, %s17
    $region7: #{tpu_custom_call.1} parent=1 // loop_footer_branch
      %16 = sbr.rel target = $region3
    $region8: #{tpu_custom_call.1} parent=1 // loop_exit
      _
    %684 = vsyncpa [#allocation3], 1
    %s685 = scalar_lea.sflag [#allocation3], 1
    %686 = vsyncpa %s685, 1
    %687 = vsyncpa [#allocation6], 1
    %688 = vsyncpa [#allocation4], 1
    %s689 = scalar_lea.sflag [#allocation4], 1
    %690 = vsyncpa %s689, 1

</llo_original>
